<compile_context>
chip_gen: v5e
topology: v5e:2x2
jax: 0.10.0
libtpu: 0.0.40
codegen_flags: <defaults>
</compile_context>

<pallas_src>
import functools
import math

import jax
import jax.numpy as jnp
from jax.experimental import pallas as pl
from jax.experimental.pallas import tpu as pltpu

_LANE = 128
_TILE_ALIGN = 32            # int8-native sublane tiling for the mask blocks


def _round_up(v, m):
    return (v + m - 1) // m * m


@functools.lru_cache(maxsize=None)
def _vmem_limit_bytes():
    """~112 MiB on v5e/v6e (128 MiB VMEM), ~48 MiB on v7x (64 MiB VMEM)."""
    cap = None
    try:
        cap = getattr(pltpu.get_tpu_info(), "vmem_capacity_bytes", None)
    except Exception:
        cap = None
    if not cap:
        cap = 64 * 1024 * 1024            # conservative: v7x physical VMEM / TC
    return int(min(cap - 16 * 1024 * 1024, 112 * 1024 * 1024))


@functools.lru_cache(maxsize=None)
def _single_buffer_supported():
    """Probe whether pl.Buffered(1) (single-buffered invariant blocks) lowers."""
    try:
        def _probe(x_ref, o_ref):
            o_ref[...] = x_ref[...] + 1.0

        fn = pl.pallas_call(
            _probe,
            out_shape=jax.ShapeDtypeStruct((16, 128), jnp.float32),
            grid=(2,),
            in_specs=[pl.BlockSpec((8, 128), lambda i: (0, 0),
                                   pipeline_mode=pl.Buffered(1))],
            out_specs=pl.BlockSpec((8, 128), lambda i: (i, 0)),
        )
        jax.block_until_ready(fn(jnp.zeros((8, 128), jnp.float32)))
        return True
    except Exception:
        return False


def _spec(shape, index_map, *, invariant, single_buf):
    """BlockSpec; grid-invariant blocks are single-buffered when supported."""
    if invariant and single_buf:
        return pl.BlockSpec(shape, index_map, pipeline_mode=pl.Buffered(1))
    return pl.BlockSpec(shape, index_map)


# ---------------------------------------------------------------------------
# Kernel 1: fused per-node projection (tiled over node rows), one bf16 matmul.
#   h_aug[:, :hidden]  = x @ W_src            (messages)
#   h_aug[:, hidden]   = x @ (W_src @ att_src)   -> a_src
#   h_aug[:, hidden+1] = x @ (W_dst @ att_dst)   -> a_dst
#   h_aug[:, hidden+2] = 1.0                     -> softmax-denominator column
# ---------------------------------------------------------------------------
def _prep_kernel(x_ref, w_ref, h_ref, *, ones_col):
    h = jnp.dot(x_ref[...], w_ref[...], preferred_element_type=jnp.float32)
    lane = jax.lax.broadcasted_iota(jnp.int32, h.shape, 1)
    h = jnp.where(lane == ones_col, 1.0, h)
    h_ref[...] = h.astype(jnp.bfloat16)


# ---------------------------------------------------------------------------
# Kernel 2: GAT masked softmax + aggregation + ReLU + final Linear, dst-tiled.
# ---------------------------------------------------------------------------
def _gat_agg_kernel(a_dst_ref, a_src_ref, mask_ref, h_aug_ref,
                    gat_bias_ref, w_lin_ref, b_lin_ref, out_ref, *, ones_col):
    # edge logits for this destination tile: (T, 1) + (1, N) -> (T, N), f32
    e = a_dst_ref[...] + a_src_ref[...]
    e = jnp.where(e > 0, e, 0.2 * e)                       # LeakyReLU(0.2)
    # int8 0/1 mask -> single additive bias; masked entries underflow to exp==0
    e = e + (mask_ref[...].astype(jnp.float32) - 1.0) * 1e9
    e = e - jnp.max(e, axis=-1, keepdims=True)
    p = jnp.exp(e).astype(jnp.bfloat16)                    # unnormalised weights

    # aggregation: bf16 x bf16 -> f32 accumulate on the MXU.
    # The ones column of h_aug makes agg[:, ones_col] the softmax denominator,
    # so no XLU row-sum / (T,N) renormalize multiply is needed.
    agg = jnp.dot(p, h_aug_ref[...], preferred_element_type=jnp.float32)
    inv = pl.reciprocal(agg[:, ones_col:ones_col + 1], approx=True)
    h = agg * inv                                          # (T, h_p) scale only
    h = jnp.maximum(h + gat_bias_ref[...], 0.0)            # GAT bias + ReLU

    out_ref[...] = (jnp.dot(h.astype(jnp.bfloat16), w_lin_ref[...],
                            preferred_element_type=jnp.float32)
                    + b_lin_ref[...])


def community_gnn_encoder(x, edge_index, params, *, tile_dst=256):
    """x: (N, Fin) float32, edge_index: (2, E) int32 [src; dst]."""
    return _encoder_impl(x, edge_index, params,
                         tile_dst=int(tile_dst),
                         single_buf=_single_buffer_supported(),
                         vmem_limit=_vmem_limit_bytes())


@functools.partial(jax.jit,
                   static_argnames=("tile_dst", "single_buf", "vmem_limit"))
def _encoder_impl(x, edge_index, params, *, tile_dst, single_buf, vmem_limit):
    n, fin = x.shape
    hidden = params["w_src"].shape[1]
    out_ch = params["w_lin"].shape[1]
    f32, bf16 = jnp.float32, jnp.bfloat16

    # ---- padded sizes (lane-dense features; 3 spare h-lanes for folds + ones) ---
    fin_p = _round_up(fin, _LANE)
    h_p = _round_up(hidden + 3, _LANE)
    out_p = _round_up(out_ch, _LANE)
    att_src_col, att_dst_col, ones_col = hidden, hidden + 1, hidden + 2

    tile = min(_round_up(tile_dst, _TILE_ALIGN), _round_up(n, _TILE_ALIGN))
    # Even tile count (balanced across v7x's 2 TCs) and 128-lane-aligned src axis.
    n_p = _round_up(n, math.lcm(2 * tile, _LANE))
    grid = (n_p // tile,)

    # ---- padded parameters / inputs, built directly in their streamed dtypes ----
    x_p = jnp.zeros((n_p, fin_p), bf16).at[:n, :fin].set(x.astype(bf16))
    w_aug = jnp.zeros((fin_p, h_p), f32)
    w_aug = w_aug.at[:fin, :hidden].set(params["w_src"])
    # fold attention vectors into spare projection columns:
    #   a_src = x @ (W_src @ att_src),  a_dst = x @ (W_dst @ att_dst)
    w_aug = w_aug.at[:fin, att_src_col].set(
        params["w_src"] @ params["att_src"].reshape(hidden))
    w_aug = w_aug.at[:fin, att_dst_col].set(
        params["w_dst"] @ params["att_dst"].reshape(hidden))
    w_aug = w_aug.astype(bf16)
    gat_bias = jnp.zeros((1, h_p), f32).at[0, :hidden].set(
        params["gat_bias"].reshape(-1))
    w_lin = (jnp.zeros((h_p, out_p), f32)
             .at[:hidden, :out_ch].set(params["w_lin"]).astype(bf16))
    b_lin = jnp.zeros((1, out_p), f32).at[0, :out_ch].set(
        params["b_lin"].reshape(-1))

    # ---- dense connectivity mask, int8 0/1 (1 byte per entry of HBM traffic) ----
    # mask[j, i] = 1 iff edge i -> j (self-loops added): softmax over incoming
    # edges per destination node.  Duplicate edges collapse to one entry.
    src, dst = edge_index[0], edge_index[1]
    mask = jnp.zeros((n_p, n_p), jnp.int8).at[dst, src].set(1)
    mask = mask.at[jnp.arange(n), jnp.arange(n)].set(1)

    # ---- kernel 1: fused projection + folded attention + ones column ------------
    h_aug = pl.pallas_call(
        functools.partial(_prep_kernel, ones_col=ones_col),
        out_shape=jax.ShapeDtypeStruct((n_p, h_p), bf16),
        grid_spec=pltpu.PrefetchScalarGridSpec(
            num_scalar_prefetch=0,
            grid=grid,
            in_specs=[
                _spec((tile, fin_p), lambda i: (i, 0),
                      invariant=False, single_buf=single_buf),   # x tile (stream)
                _spec((fin_p, h_p), lambda i: (0, 0),
                      invariant=True, single_buf=single_buf),    # W (resident)
            ],
            out_specs=pl.BlockSpec((tile, h_p), lambda i: (i, 0)),
        ),
        compiler_params=pltpu.CompilerParams(
            dimension_semantics=("parallel",),
            vmem_limit_bytes=vmem_limit),
    )(x_p, w_aug)

    # per-node attention scalars, read from the spare h_aug lanes (f32 softmax math)
    a_src_row = h_aug[:, att_src_col].astype(f32).reshape(1, n_p)
    a_dst_col = h_aug[:, att_dst_col:att_dst_col + 1].astype(f32)

    # ---- kernel 2: masked softmax + aggregation + ReLU + Linear, dst-tiled ------
    out_pad = pl.pallas_call(
        functools.partial(_gat_agg_kernel, ones_col=ones_col),
        out_shape=jax.ShapeDtypeStruct((n_p, out_p), f32),
        grid_spec=pltpu.PrefetchScalarGridSpec(
            num_scalar_prefetch=0,
            grid=grid,
            in_specs=[
                _spec((tile, 1), lambda i: (i, 0),
                      invariant=False, single_buf=single_buf),   # a_dst tile
                _spec((1, n_p), lambda i: (0, 0),
                      invariant=True, single_buf=single_buf),    # a_src row
                _spec((tile, n_p), lambda i: (i, 0),
                      invariant=False, single_buf=single_buf),   # int8 mask tile
                _spec((n_p, h_p), lambda i: (0, 0),
                      invariant=True, single_buf=single_buf),    # h_aug (resident)
                _spec((1, h_p), lambda i: (0, 0),
                      invariant=True, single_buf=single_buf),    # GAT bias
                _spec((h_p, out_p), lambda i: (0, 0),
                      invariant=True, single_buf=single_buf),    # W_lin
                _spec((1, out_p), lambda i: (0, 0),
                      invariant=True, single_buf=single_buf),    # b_lin
            ],
            out_specs=pl.BlockSpec((tile, out_p), lambda i: (i, 0)),
        ),
        compiler_params=pltpu.CompilerParams(
            dimension_semantics=("parallel",),   # dst tiles split across v7x's 2 TCs
            vmem_limit_bytes=vmem_limit),
    )(a_dst_col, a_src_row, mask, h_aug, gat_bias, w_lin, b_lin)

    return out_pad[:n, :out_ch]


def init_params(key, in_features, hidden_channels, out_channels):
    ks = jax.random.split(key, 6)
    # Stored transposed vs. PyTorch (in, out) so the kernel does x @ W.
    return {
        "w_src": jax.random.normal(ks[0], (in_features, hidden_channels), jnp.float32) * 0.2,
        "w_dst": jax.random.normal(ks[1], (in_features, hidden_channels), jnp.float32) * 0.2,
        "att_src": jax.random.normal(ks[2], (1, hidden_channels), jnp.float32) * 0.2,
        "att_dst": jax.random.normal(ks[3], (1, hidden_channels), jnp.float32) * 0.2,
        "gat_bias": jnp.zeros((1, hidden_channels), jnp.float32),
        "w_lin": jax.random.normal(ks[4], (hidden_channels, out_channels), jnp.float32) * 0.2,
        "b_lin": jax.random.normal(ks[5], (1, out_channels), jnp.float32) * 0.1,
    }


def _reference(x, edge_index, params):
    """Pure-JAX GATConv(heads=1) -> ReLU -> Linear reference."""
    n = x.shape[0]
    h_src = x @ params["w_src"]
    h_dst = x @ params["w_dst"]
    a_src = jnp.sum(h_src * params["att_src"], axis=-1)
    a_dst = jnp.sum(h_dst * params["att_dst"], axis=-1)
    e = a_dst[:, None] + a_src[None, :]
    e = jnp.where(e > 0, e, 0.2 * e)
    src, dst = edge_index[0], edge_index[1]
    mask = jnp.zeros((n, n), jnp.float32).at[dst, src].set(1.0)
    mask = mask.at[jnp.arange(n), jnp.arange(n)].set(1.0)
    e = jnp.where(mask > 0, e, -jnp.inf)
    alpha = jax.nn.softmax(e, axis=-1)
    h = jnp.maximum(alpha @ h_src + params["gat_bias"], 0.0)
    return h @ params["w_lin"] + params["b_lin"]


if __name__ == "__main__":
    key = jax.random.PRNGKey(0)
    k_x, k_e, k_p = jax.random.split(key, 3)

    N, FIN, HIDDEN, OUT, E = 48, 8, 16, 8, 160

    x = jax.random.normal(k_x, (N, FIN), jnp.float32)
    edge_index = jax.random.randint(k_e, (2, E), 0, N, dtype=jnp.int32)
    params = init_params(k_p, FIN, HIDDEN, OUT)

    # tile_dst=32 -> 4 destination tiles (even count): exercises the pipelined
    # grid path and the balanced v7x two-TensorCore split.
    out = community_gnn_encoder(x, edge_index, params, tile_dst=32)
    jax.block_until_ready(out)

    ref = _reference(x, edge_index, params)
    assert out.shape == (N, OUT) and out.dtype == jnp.float32
    assert bool(jnp.allclose(out, ref, atol=5e-2, rtol=5e-2))
    print("KERNEL_OK")
</pallas_src>

<mosaic_0001>
module attributes {stable_mosaic.version = 11 : i64} {
  func.func @_probe(%arg0: i32, %arg1: memref<8x128xf32, #tpu.memory_space<vmem>>, %arg2: memref<8x128xf32, #tpu.memory_space<vmem>>) attributes {dimension_semantics = [#tpu.dimension_semantics<arbitrary>], iteration_bounds = array<i64: 2>, scalar_prefetch = 0 : i64, scratch_operands = 0 : i64, tpu.core_type = #tpu.core_type<tc>, window_params = [{pipeline_mode = #tpu.pipeline_mode<synchronous>, transform_indices = @transform_0, window_bounds = array<i64: 8, 128>}, {transform_indices = @transform_1, window_bounds = array<i64: 8, 128>}]} {
    %c0 = arith.constant 0 : index
    %c0_0 = arith.constant 0 : index
    %0 = vector.load %arg1[%c0, %c0_0] : memref<8x128xf32, #tpu.memory_space<vmem>>, vector<8x128xf32>
    %cst = arith.constant 1.000000e+00 : f32
    %1 = vector.broadcast %cst : f32 to vector<8x128xf32>
    %2 = arith.addf %0, %1 : vector<8x128xf32>
    %c0_1 = arith.constant 0 : index
    %c0_2 = arith.constant 0 : index
    %3 = vector.load %arg2[%c0_1, %c0_2] : memref<8x128xf32, #tpu.memory_space<vmem>>, vector<8x128xf32>
    tpu.vector_store %arg2[%c0_1, %c0_2], %2 {strides = array<i32>} : memref<8x128xf32, #tpu.memory_space<vmem>>, vector<8x128xf32>,
    return
  }
  func.func @transform_0(%arg0: i32) -> (i32, i32) {
    %c0_i32 = arith.constant 0 : i32
    %c0_i32_0 = arith.constant 0 : i32
    %c0_i32_1 = arith.constant 0 : i32
    return %c0_i32, %c0_i32_0 : i32, i32
  }
  func.func @transform_1(%arg0: i32) -> (i32, i32) {
    %c0_i32 = arith.constant 0 : i32
    %c0_i32_0 = arith.constant 0 : i32
    return %arg0, %c0_i32 : i32, i32
  }
}

module attributes {stable_mosaic.version = 11 : i64} {
  func.func @_prep_kernel(%arg0: i32, %arg1: memref<32x128xbf16, #tpu.memory_space<vmem>>, %arg2: memref<128x128xbf16, #tpu.memory_space<vmem>>, %arg3: memref<32x128xbf16, #tpu.memory_space<vmem>>) attributes {dimension_semantics = [#tpu.dimension_semantics<parallel>], iteration_bounds = array<i64: 4>, scalar_prefetch = 0 : i64, scratch_operands = 0 : i64, tpu.core_type = #tpu.core_type<tc>, window_params = [{transform_indices = @transform_0, window_bounds = array<i64: 32, 128>}, {pipeline_mode = #tpu.pipeline_mode<synchronous>, transform_indices = @transform_1, window_bounds = array<i64: 128, 128>}, {transform_indices = @transform_2, window_bounds = array<i64: 32, 128>}]} {
    %c0 = arith.constant 0 : index
    %c0_0 = arith.constant 0 : index
    %0 = vector.load %arg1[%c0, %c0_0] : memref<32x128xbf16, #tpu.memory_space<vmem>>, vector<32x128xbf16>
    %c0_1 = arith.constant 0 : index
    %c0_2 = arith.constant 0 : index
    %1 = vector.load %arg2[%c0_1, %c0_2] : memref<128x128xbf16, #tpu.memory_space<vmem>>, vector<128x128xbf16>
    %cst = arith.constant dense<0.000000e+00> : vector<32x128xf32>
    %2 = tpu.matmul %0, %1, %cst {dimension_numbers = #tpu.dot_dimension_numbers<[1], [0], [0], [1], [0, 0, 1, 1], [], []>} : vector<32x128xbf16>, vector<128x128xbf16>, vector<32x128xf32> -> vector<32x128xf32>
    %3 = tpu.iota {dimensions = array<i32: 1>} : vector<32x128xi32>
    %c18_i32 = arith.constant 18 : i32
    %4 = vector.broadcast %c18_i32 : i32 to vector<32x128xi32>
    %5 = arith.cmpi eq, %3, %4 : vector<32x128xi32>
    %cst_3 = arith.constant 1.000000e+00 : f32
    %6 = vector.broadcast %cst_3 : f32 to vector<32x128xf32>
    %7 = arith.select %5, %6, %2 : vector<32x128xi1>, vector<32x128xf32>
    %8 = arith.truncf %7 : vector<32x128xf32> to vector<32x128xbf16>
    %c0_4 = arith.constant 0 : index
    %c0_5 = arith.constant 0 : index
    %9 = vector.load %arg3[%c0_4, %c0_5] : memref<32x128xbf16, #tpu.memory_space<vmem>>, vector<32x128xbf16>
    tpu.vector_store %arg3[%c0_4, %c0_5], %8 {strides = array<i32>} : memref<32x128xbf16, #tpu.memory_space<vmem>>, vector<32x128xbf16>,
    return
  }
  func.func @transform_0(%arg0: i32) -> (i32, i32) {
    %c0_i32 = arith.constant 0 : i32
    %c0_i32_0 = arith.constant 0 : i32
    return %arg0, %c0_i32 : i32, i32
  }
  func.func @transform_1(%arg0: i32) -> (i32, i32) {
    %c0_i32 = arith.constant 0 : i32
    %c0_i32_0 = arith.constant 0 : i32
    %c0_i32_1 = arith.constant 0 : i32
    return %c0_i32, %c0_i32_0 : i32, i32
  }
  func.func @transform_2(%arg0: i32) -> (i32, i32) {
    %c0_i32 = arith.constant 0 : i32
    %c0_i32_0 = arith.constant 0 : i32
    return %arg0, %c0_i32 : i32, i32
  }
}

module attributes {stable_mosaic.version = 11 : i64} {
  func.func @_gat_agg_kernel(%arg0: i32, %arg1: memref<32x1xf32, #tpu.memory_space<vmem>>, %arg2: memref<1x128xf32, #tpu.memory_space<vmem>>, %arg3: memref<32x128xi8, #tpu.memory_space<vmem>>, %arg4: memref<128x128xbf16, #tpu.memory_space<vmem>>, %arg5: memref<1x128xf32, #tpu.memory_space<vmem>>, %arg6: memref<128x128xbf16, #tpu.memory_space<vmem>>, %arg7: memref<1x128xf32, #tpu.memory_space<vmem>>, %arg8: memref<32x128xf32, #tpu.memory_space<vmem>>) attributes {dimension_semantics = [#tpu.dimension_semantics<parallel>], iteration_bounds = array<i64: 4>, scalar_prefetch = 0 : i64, scratch_operands = 0 : i64, tpu.core_type = #tpu.core_type<tc>, window_params = [{transform_indices = @transform_0, window_bounds = array<i64: 32, 1>}, {pipeline_mode = #tpu.pipeline_mode<synchronous>, transform_indices = @transform_1, window_bounds = array<i64: 1, 128>}, {transform_indices = @transform_2, window_bounds = array<i64: 32, 128>}, {pipeline_mode = #tpu.pipeline_mode<synchronous>, transform_indices = @transform_3, window_bounds = array<i64: 128, 128>}, {pipeline_mode = #tpu.pipeline_mode<synchronous>, transform_indices = @transform_4, window_bounds = array<i64: 1, 128>}, {pipeline_mode = #tpu.pipeline_mode<synchronous>, transform_indices = @transform_5, window_bounds = array<i64: 128, 128>}, {pipeline_mode = #tpu.pipeline_mode<synchronous>, transform_indices = @transform_6, window_bounds = array<i64: 1, 128>}, {transform_indices = @transform_7, window_bounds = array<i64: 32, 128>}]} {
    %c0 = arith.constant 0 : index
    %c0_0 = arith.constant 0 : index
    %0 = vector.load %arg1[%c0, %c0_0] : memref<32x1xf32, #tpu.memory_space<vmem>>, vector<32x1xf32>
    %c0_1 = arith.constant 0 : index
    %c0_2 = arith.constant 0 : index
    %1 = vector.load %arg2[%c0_1, %c0_2] : memref<1x128xf32, #tpu.memory_space<vmem>>, vector<1x128xf32>
    %2 = vector.broadcast %0 : vector<32x1xf32> to vector<32x128xf32>
    %3 = vector.broadcast %1 : vector<1x128xf32> to vector<32x128xf32>
    %4 = arith.addf %2, %3 : vector<32x128xf32>
    %cst = arith.constant 0.000000e+00 : f32
    %5 = vector.broadcast %cst : f32 to vector<32x128xf32>
    %6 = arith.cmpf ogt, %4, %5 : vector<32x128xf32>
    %cst_3 = arith.constant 2.000000e-01 : f32
    %7 = vector.broadcast %cst_3 : f32 to vector<32x128xf32>
    %8 = arith.mulf %7, %4 : vector<32x128xf32>
    %9 = arith.select %6, %4, %8 : vector<32x128xi1>, vector<32x128xf32>
    %c0_4 = arith.constant 0 : index
    %c0_5 = arith.constant 0 : index
    %10 = vector.load %arg3[%c0_4, %c0_5] : memref<32x128xi8, #tpu.memory_space<vmem>>, vector<32x128xi8>
    %11 = arith.sitofp %10 : vector<32x128xi8> to vector<32x128xf32>
    %cst_6 = arith.constant 1.000000e+00 : f32
    %12 = vector.broadcast %cst_6 : f32 to vector<32x128xf32>
    %13 = arith.subf %11, %12 : vector<32x128xf32>
    %cst_7 = arith.constant 1.000000e+09 : f32
    %14 = vector.broadcast %cst_7 : f32 to vector<32x128xf32>
    %15 = arith.mulf %13, %14 : vector<32x128xf32>
    %16 = arith.addf %9, %15 : vector<32x128xf32>
    %cst_8 = arith.constant dense<0xFF800000> : vector<32xf32>
    %17 = vector.multi_reduction <maximumf>, %16, %cst_8 [1] : vector<32x128xf32> to vector<32xf32>
    %18 = vector.shape_cast %17 : vector<32xf32> to vector<32x1xf32>
    %19 = vector.broadcast %18 : vector<32x1xf32> to vector<32x128xf32>
    %20 = arith.subf %16, %19 : vector<32x128xf32>
    %21 = math.exp %20 : vector<32x128xf32>
    %22 = arith.truncf %21 : vector<32x128xf32> to vector<32x128xbf16>
    %c0_9 = arith.constant 0 : index
    %c0_10 = arith.constant 0 : index
    %23 = vector.load %arg4[%c0_9, %c0_10] : memref<128x128xbf16, #tpu.memory_space<vmem>>, vector<128x128xbf16>
    %cst_11 = arith.constant dense<0.000000e+00> : vector<32x128xf32>
    %24 = tpu.matmul %22, %23, %cst_11 {dimension_numbers = #tpu.dot_dimension_numbers<[1], [0], [0], [1], [0, 0, 1, 1], [], []>} : vector<32x128xbf16>, vector<128x128xbf16>, vector<32x128xf32> -> vector<32x128xf32>
    %25 = vector.extract_strided_slice %24 {offsets = [0, 18], sizes = [32, 1], strides = [1, 1]} : vector<32x128xf32> to vector<32x1xf32>
    %26 = tpu.reciprocal %25 {approx = true} : vector<32x1xf32> -> vector<32x1xf32>
    %27 = vector.broadcast %26 : vector<32x1xf32> to vector<32x128xf32>
    %28 = arith.mulf %24, %27 : vector<32x128xf32>
    %c0_12 = arith.constant 0 : index
    %c0_13 = arith.constant 0 : index
    %29 = vector.load %arg5[%c0_12, %c0_13] : memref<1x128xf32, #tpu.memory_space<vmem>>, vector<1x128xf32>
    %30 = vector.broadcast %29 : vector<1x128xf32> to vector<32x128xf32>
    %31 = arith.addf %28, %30 : vector<32x128xf32>
    %cst_14 = arith.constant 0.000000e+00 : f32
    %32 = vector.broadcast %cst_14 : f32 to vector<32x128xf32>
    %33 = arith.maximumf %31, %32 : vector<32x128xf32>
    %34 = arith.truncf %33 : vector<32x128xf32> to vector<32x128xbf16>
    %c0_15 = arith.constant 0 : index
    %c0_16 = arith.constant 0 : index
    %35 = vector.load %arg6[%c0_15, %c0_16] : memref<128x128xbf16, #tpu.memory_space<vmem>>, vector<128x128xbf16>
    %cst_17 = arith.constant dense<0.000000e+00> : vector<32x128xf32>
    %36 = tpu.matmul %34, %35, %cst_17 {dimension_numbers = #tpu.dot_dimension_numbers<[1], [0], [0], [1], [0, 0, 1, 1], [], []>} : vector<32x128xbf16>, vector<128x128xbf16>, vector<32x128xf32> -> vector<32x128xf32>
    %c0_18 = arith.constant 0 : index
    %c0_19 = arith.constant 0 : index
    %37 = vector.load %arg7[%c0_18, %c0_19] : memref<1x128xf32, #tpu.memory_space<vmem>>, vector<1x128xf32>
    %38 = vector.broadcast %37 : vector<1x128xf32> to vector<32x128xf32>
    %39 = arith.addf %36, %38 : vector<32x128xf32>
    %c0_20 = arith.constant 0 : index
    %c0_21 = arith.constant 0 : index
    %40 = vector.load %arg8[%c0_20, %c0_21] : memref<32x128xf32, #tpu.memory_space<vmem>>, vector<32x128xf32>
    tpu.vector_store %arg8[%c0_20, %c0_21], %39 {strides = array<i32>} : memref<32x128xf32, #tpu.memory_space<vmem>>, vector<32x128xf32>,
    return
  }
  func.func @transform_0(%arg0: i32) -> (i32, i32) {
    %c0_i32 = arith.constant 0 : i32
    %c0_i32_0 = arith.constant 0 : i32
    return %arg0, %c0_i32 : i32, i32
  }
  func.func @transform_1(%arg0: i32) -> (i32, i32) {
    %c0_i32 = arith.constant 0 : i32
    %c0_i32_0 = arith.constant 0 : i32
    %c0_i32_1 = arith.constant 0 : i32
    return %c0_i32, %c0_i32_0 : i32, i32
  }
  func.func @transform_2(%arg0: i32) -> (i32, i32) {
    %c0_i32 = arith.constant 0 : i32
    %c0_i32_0 = arith.constant 0 : i32
    return %arg0, %c0_i32 : i32, i32
  }
  func.func @transform_3(%arg0: i32) -> (i32, i32) {
    %c0_i32 = arith.constant 0 : i32
    %c0_i32_0 = arith.constant 0 : i32
    %c0_i32_1 = arith.constant 0 : i32
    return %c0_i32, %c0_i32_0 : i32, i32
  }
  func.func @transform_4(%arg0: i32) -> (i32, i32) {
    %c0_i32 = arith.constant 0 : i32
    %c0_i32_0 = arith.constant 0 : i32
    %c0_i32_1 = arith.constant 0 : i32
    return %c0_i32, %c0_i32_0 : i32, i32
  }
  func.func @transform_5(%arg0: i32) -> (i32, i32) {
    %c0_i32 = arith.constant 0 : i32
    %c0_i32_0 = arith.constant 0 : i32
    %c0_i32_1 = arith.constant 0 : i32
    return %c0_i32, %c0_i32_0 : i32, i32
  }
  func.func @transform_6(%arg0: i32) -> (i32, i32) {
    %c0_i32 = arith.constant 0 : i32
    %c0_i32_0 = arith.constant 0 : i32
    %c0_i32_1 = arith.constant 0 : i32
    return %c0_i32, %c0_i32_0 : i32, i32
  }
  func.func @transform_7(%arg0: i32) -> (i32, i32) {
    %c0_i32 = arith.constant 0 : i32
    %c0_i32_0 = arith.constant 0 : i32
    return %arg0, %c0_i32 : i32, i32
  }
}

</mosaic_0001>

<llo_original>
// kernel: tpu_custom_call.1
$region0: #{tpu_custom_call.1}
  #allocation0 [shape = 'u32[]', space=smem, size = 0x4, offset = 0x4, fixed_abs, tag = 'smem constant byte address 0x4 - core index']
  #allocation1 [shape = 'u32[72,128]{1,0:T(1,128)}', space=vmem, size = 0x9000, scoped, tag = 'internal scratch']
  %s0 = inlined_call_operand.hbm [shape: f32[8,128], index: 0, kind: input, shape index: {}]
  %s1 = inlined_call_operand.hbm [shape: f32[16,128], index: 1, kind: output, shape index: {}]
  %s2 = sld [smem:[#allocation0]]
  $region41: #{tpu_custom_call.1} parent=0
    _
  %s4 = ssub.s32 1, %s2
  %s5 = scalar_select 0, %s4, %s2
  $region1: #{tpu_custom_call.1} parent=0
    #allocation2 [shape = 'u8[4096]{0}', space=vmem, size = 0x1000, scoped, tag = 'input window, operand 0, single buffered']
    #allocation3 [shape = 's32[2]{0}', space=sflag, size = 0x8, scoped, tag = 'scoped memory for tpu_custom_call.1']
    #allocation4 [shape = 's32[2]{0}', space=sflag, size = 0x8, scoped, tag = 'scoped memory for tpu_custom_call.1']
    #allocation5 [shape = 'u8[8192]{0}', space=vmem, size = 0x2000, scoped, tag = 'output window, operand 0']
    %6 = vsyncpa [#allocation3], 0
    %7 = vsyncpa [#allocation4], 0
    %s8 = scalar_lea.sflag [#allocation4], 1
    %9 = vsyncpa %s8, 0
    loop: start=0, step=1, limit=4
    $region2: #{tpu_custom_call.1} parent=1 // loop_pre_header
      _
    $region3: #{tpu_custom_call.1} parent=1 // loop_header
      %s11 = sphi 0, %s15
      %p12 = scmp.ge.s32.totalorder %s11, 4
      %s19 = sphi 0, %s19
      %s21 = sphi 0, %s19
      %s22 = sphi 0, %s21
      %s36 = sphi 0, %s22
      %s42 = sphi 0, %s44
      %s45 = sphi 0, %s42
      %s46 = sphi 0, %s45
      %s62 = sphi 0, %s46
    $region4: #{tpu_custom_call.1} parent=1 // loop_header_branch
      %14 = sbr.rel (%p12) target = $region8
    $region5: #{tpu_custom_call.1} parent=1 // loop_body
      %s16 = ssub.s32 %s11, 1
      %s17 = ssub.s32 %s11, 2
      %s18 = sadd.s32 %s11, 1
      %s20 = sadd.s32 %s19, 1
      %p23 = scmp.eq.s32.totalorder %s11, 1
      %p24 = scmp.ne.s32.totalorder %s19, %s21
      %p25 = scmp.eq.s32.totalorder %s11, 0
      %p26 = por %p24, %p25
      %p27 = scmp.ne.s32.totalorder %s19, %s21
      %p28 = scmp.eq.s32.totalorder %s16, 1
      %p29 = por %p27, %p28
      %p30 = scmp.ne.s32.totalorder %s21, %s22
      %p31 = scmp.eq.s32.totalorder %s16, 0
      %p32 = por %p30, %p31
      %p33 = scmp.ne.s32.totalorder %s21, %s22
      %p34 = scmp.eq.s32.totalorder %s17, 1
      %p35 = por %p33, %p34
      %p37 = scmp.ne.s32.totalorder %s22, %s36
      %p38 = scmp.eq.s32.totalorder %s17, 0
      %p39 = por %p37, %p38
      %s40 = ssub.s32 %s11, %s18
      %p41 = scmp.eq.s32.totalorder %s40, 0
      %s43 = sadd.s32 %s42, 1
      %s44 = scalar_select %p41, %s42, %s43
      %p47 = pneg %p41
      %p48 = scmp.eq.s32.totalorder %s11, 1
      %p49 = por %p47, %p48
      %p50 = scmp.ne.s32.totalorder %s42, %s45
      %p51 = scmp.eq.s32.totalorder %s11, 0
      %p52 = por %p50, %p51
      %p53 = scmp.ne.s32.totalorder %s42, %s45
      %p54 = scmp.eq.s32.totalorder %s16, 1
      %p55 = por %p53, %p54
      %p56 = scmp.ne.s32.totalorder %s45, %s46
      %p57 = scmp.eq.s32.totalorder %s16, 0
      %p58 = por %p56, %p57
      %p59 = scmp.ne.s32.totalorder %s45, %s46
      %p60 = scmp.eq.s32.totalorder %s17, 1
      %p61 = por %p59, %p60
      %p63 = scmp.ne.s32.totalorder %s46, %s62
      %p64 = scmp.eq.s32.totalorder %s17, 0
      %p65 = por %p63, %p64
      %p66 = scmp.le.s32.totalorder 1, %s11
      %p67 = scmp.lt.s32.totalorder %s11, 3
      %p68 = pnand %p66, %p67
      %p69 = pneg %p68
      // Predicated region
      $region9: #{tpu_custom_call.1} parent=5 // pred_check
        _
      $region10: #{tpu_custom_call.1} parent=5 // pred_check_branch
        %71 = sbr.rel (%p68) target = $region12
      $region11: #{tpu_custom_call.1} parent=5 // pred_region
        %s72 = ssub.s32 %s11, 1
        // Predicated region
        $region13: #{tpu_custom_call.1} parent=11 // pred_check
          %p73 = pneg %p32
        $region14: #{tpu_custom_call.1} parent=11 // pred_check_branch
          %75 = sbr.rel (%p73) target = $region16
        $region15: #{tpu_custom_call.1} parent=11 // pred_region
          %77 = vsyncadd [#allocation3], 0
          %s79 = sshll.u32 %s0, 4
          %s80 = int_to_ptr.hbm [resolvable:$true] %s79
          %s81 = sshll.u32 [#allocation2], 4
          %s82 = int_to_ptr.vmem [resolvable:$true] %s81
          %84 = dma.hbm_to_vmem [thread:$0]  %s80, 128, %s82, [#allocation3]
        $region16: #{tpu_custom_call.1} parent=11 // pred_fallthru
          _
      $region12: #{tpu_custom_call.1} parent=5 // pred_fallthru
        _
      %p85 = scmp.lt.s32.totalorder %s11, 2
      // Predicated region
      $region17: #{tpu_custom_call.1} parent=5 // pred_check
        %p86 = pneg %p85
      $region18: #{tpu_custom_call.1} parent=5 // pred_check_branch
        %88 = sbr.rel (%p86) target = $region20
      $region19: #{tpu_custom_call.1} parent=5 // pred_region
        _
      $region20: #{tpu_custom_call.1} parent=5 // pred_fallthru
        _
      %p89 = scmp.le.s32.totalorder 1, %s11
      %p90 = scmp.lt.s32.totalorder %s11, 3
      %p91 = pnand %p89, %p90
      %p92 = pneg %p91
      // Predicated region
      $region21: #{tpu_custom_call.1} parent=5 // pred_check
        _
      $region22: #{tpu_custom_call.1} parent=5 // pred_check_branch
        %94 = sbr.rel (%p91) target = $region24
      $region23: #{tpu_custom_call.1} parent=5 // pred_region
        %s95 = ssub.s32 %s11, 1
        // Predicated region
        $region25: #{tpu_custom_call.1} parent=23 // pred_check
          %p96 = pneg %p32
        $region26: #{tpu_custom_call.1} parent=23 // pred_check_branch
          %98 = sbr.rel (%p96) target = $region28
        $region27: #{tpu_custom_call.1} parent=23 // pred_region
          %100 = dma.done [#allocation3], 128
        $region28: #{tpu_custom_call.1} parent=23 // pred_fallthru
          _
        %p101 = pneg %p32
        %p102 = pneg %p29
        %p103 = pneg %p58
        %p104 = pneg %p55
        %s105 = sand.u32 %s45, 1
        %s106 = scalar_lea.sflag [#allocation4], %s105
        %s107 = sand.u32 %s45, 1
        %s108 = smul.addr %s107, 8
        %s109 = scalar_lea.vmem [#allocation5], %s108
        %v110 = vld [vmem:[#allocation2] sm:$0xff]
        %v111 = vadd.f32 %v110, 1.0
        %112 = vst [vmem:[%s109] sm:$0xff] %v111
        %s113 = sand.u32 %s45, 1
        %s114 = scalar_lea.sflag [#allocation4], %s113
        %s115 = sand.u32 %s45, 1
        %s116 = smul.addr %s115, 8
        %s117 = scalar_lea.vmem [#allocation5], %s116
        // Predicated region
        $region29: #{tpu_custom_call.1} parent=23 // pred_check
          %p118 = pneg %p55
        $region30: #{tpu_custom_call.1} parent=23 // pred_check_branch
          %120 = sbr.rel (%p118) target = $region32
        $region31: #{tpu_custom_call.1} parent=23 // pred_region
          %122 = vsyncadd %s114, 0
          %s123 = smul.addr %s16, 8
          %s124 = scalar_lea.hbm %s1, %s123
          %s126 = sshll.u32 %s117, 4
          %s127 = int_to_ptr.vmem [resolvable:$true] %s126
          %s128 = sshll.u32 %s124, 4
          %s129 = int_to_ptr.hbm [resolvable:$true] %s128
          %131 = dma.vmem_to_hbm [thread:$0]  %s127, 128, %s129, %s114
        $region32: #{tpu_custom_call.1} parent=23 // pred_fallthru
          _
      $region24: #{tpu_custom_call.1} parent=5 // pred_fallthru
        _
      %p132 = scmp.le.s32.totalorder 2, %s11
      // Predicated region
      $region33: #{tpu_custom_call.1} parent=5 // pred_check
        %p133 = pneg %p132
      $region34: #{tpu_custom_call.1} parent=5 // pred_check_branch
        %135 = sbr.rel (%p133) target = $region36
      $region35: #{tpu_custom_call.1} parent=5 // pred_region
        %s136 = ssub.s32 %s11, 2
        // Predicated region
        $region37: #{tpu_custom_call.1} parent=35 // pred_check
          %p137 = pneg %p61
        $region38: #{tpu_custom_call.1} parent=35 // pred_check_branch
          %139 = sbr.rel (%p137) target = $region40
        $region39: #{tpu_custom_call.1} parent=35 // pred_region
          %s140 = sand.u32 %s46, 1
          %s141 = scalar_lea.sflag [#allocation4], %s140
          %s142 = sand.u32 %s46, 1
          %s143 = smul.addr %s142, 8
          %s144 = scalar_lea.vmem [#allocation5], %s143
          %146 = dma.done %s141, 128
        $region40: #{tpu_custom_call.1} parent=35 // pred_fallthru
          _
      $region36: #{tpu_custom_call.1} parent=5 // pred_fallthru
        _
    $region6: #{tpu_custom_call.1} parent=1 // loop_footer
      %s15 = sadd.s32 1, %s11
    $region7: #{tpu_custom_call.1} parent=1 // loop_footer_branch
      %10 = sbr.rel target = $region3
    $region8: #{tpu_custom_call.1} parent=1 // loop_exit
      _
    %147 = vsyncpa [#allocation3], 1
    %s148 = scalar_lea.sflag [#allocation3], 1
    %149 = vsyncpa %s148, 1
    %150 = vsyncpa [#allocation4], 1
    %s151 = scalar_lea.sflag [#allocation4], 1
    %152 = vsyncpa %s151, 1

// kernel: _encoder_impl.2
$region0: #{_encoder_impl.2}
  #allocation0 [shape = 'u32[]', space=smem, size = 0x4, offset = 0x4, fixed_abs, tag = 'smem constant byte address 0x4 - core index']
  #allocation1 [shape = 'u32[72,128]{1,0:T(1,128)}', space=vmem, size = 0x9000, scoped, tag = 'internal scratch']
  %s0 = inlined_call_operand.vmem [shape: bf16[128,128], index: 0, kind: input, shape index: {}]
  %s1 = inlined_call_operand.vmem [shape: bf16[128,128], index: 1, kind: input, shape index: {}]
  %s2 = inlined_call_operand.vmem [shape: bf16[128,128], index: 2, kind: output, shape index: {}]
  %s3 = sld [smem:[#allocation0]]
  $region41: #{_encoder_impl.2} parent=0
    _
  %s5 = ssub.s32 1, %s3
  %s6 = scalar_select 0, %s5, %s3
  loop: start=0, step=1, limit=6
  $region2: #{_encoder_impl.2} parent=0 // loop_pre_header
    _
  $region3: #{_encoder_impl.2} parent=0 // loop_header
    %s8 = sphi 0, %s12
    %p9 = scmp.ge.s32.totalorder %s8, 6
    %s18 = sphi 0, %s20
    %s21 = sphi 0, %s18
    %s22 = sphi 0, %s21
    %s38 = sphi 0, %s22
    %s42 = sphi 0, %s42
    %s44 = sphi 0, %s42
    %s45 = sphi 0, %s44
    %s59 = sphi 0, %s45
    %s65 = sphi 0, %s67
    %s68 = sphi 0, %s65
    %s69 = sphi 0, %s68
    %s85 = sphi 0, %s69
  $region4: #{_encoder_impl.2} parent=0 // loop_header_branch
    %11 = sbr.rel (%p9) target = $region8
  $region5: #{_encoder_impl.2} parent=0 // loop_body
    %s13 = ssub.s32 %s8, 1
    %s14 = ssub.s32 %s8, 2
    %s15 = sadd.s32 %s8, 1
    %s16 = ssub.s32 %s8, %s15
    %p17 = scmp.eq.s32.totalorder %s16, 0
    %s19 = sadd.s32 %s18, 1
    %s20 = scalar_select %p17, %s18, %s19
    %p23 = pneg %p17
    %p24 = scmp.eq.s32.totalorder %s8, 3
    %p25 = por %p23, %p24
    %p26 = scmp.ne.s32.totalorder %s18, %s21
    %p27 = scmp.eq.s32.totalorder %s8, 0
    %p28 = por %p26, %p27
    %p29 = scmp.ne.s32.totalorder %s18, %s21
    %p30 = scmp.eq.s32.totalorder %s13, 3
    %p31 = por %p29, %p30
    %p32 = scmp.ne.s32.totalorder %s21, %s22
    %p33 = scmp.eq.s32.totalorder %s13, 0
    %p34 = por %p32, %p33
    %p35 = scmp.ne.s32.totalorder %s21, %s22
    %p36 = scmp.eq.s32.totalorder %s14, 3
    %p37 = por %p35, %p36
    %p39 = scmp.ne.s32.totalorder %s22, %s38
    %p40 = scmp.eq.s32.totalorder %s14, 0
    %p41 = por %p39, %p40
    %s43 = sadd.s32 %s42, 1
    %p46 = scmp.eq.s32.totalorder %s8, 3
    %p47 = scmp.ne.s32.totalorder %s42, %s44
    %p48 = scmp.eq.s32.totalorder %s8, 0
    %p49 = por %p47, %p48
    %p50 = scmp.ne.s32.totalorder %s42, %s44
    %p51 = scmp.eq.s32.totalorder %s13, 3
    %p52 = por %p50, %p51
    %p53 = scmp.ne.s32.totalorder %s44, %s45
    %p54 = scmp.eq.s32.totalorder %s13, 0
    %p55 = por %p53, %p54
    %p56 = scmp.ne.s32.totalorder %s44, %s45
    %p57 = scmp.eq.s32.totalorder %s14, 3
    %p58 = por %p56, %p57
    %p60 = scmp.ne.s32.totalorder %s45, %s59
    %p61 = scmp.eq.s32.totalorder %s14, 0
    %p62 = por %p60, %p61
    %s63 = ssub.s32 %s8, %s15
    %p64 = scmp.eq.s32.totalorder %s63, 0
    %s66 = sadd.s32 %s65, 1
    %s67 = scalar_select %p64, %s65, %s66
    %p70 = pneg %p64
    %p71 = scmp.eq.s32.totalorder %s8, 3
    %p72 = por %p70, %p71
    %p73 = scmp.ne.s32.totalorder %s65, %s68
    %p74 = scmp.eq.s32.totalorder %s8, 0
    %p75 = por %p73, %p74
    %p76 = scmp.ne.s32.totalorder %s65, %s68
    %p77 = scmp.eq.s32.totalorder %s13, 3
    %p78 = por %p76, %p77
    %p79 = scmp.ne.s32.totalorder %s68, %s69
    %p80 = scmp.eq.s32.totalorder %s13, 0
    %p81 = por %p79, %p80
    %p82 = scmp.ne.s32.totalorder %s68, %s69
    %p83 = scmp.eq.s32.totalorder %s14, 3
    %p84 = por %p82, %p83
    %p86 = scmp.ne.s32.totalorder %s69, %s85
    %p87 = scmp.eq.s32.totalorder %s14, 0
    %p88 = por %p86, %p87
    %p89 = scmp.le.s32.totalorder 1, %s8
    %p90 = scmp.lt.s32.totalorder %s8, 5
    %p91 = pnand %p89, %p90
    %p92 = pneg %p91
    // Predicated region
    $region9: #{_encoder_impl.2} parent=5 // pred_check
      _
    $region10: #{_encoder_impl.2} parent=5 // pred_check_branch
      %94 = sbr.rel (%p91) target = $region12
    $region11: #{_encoder_impl.2} parent=5 // pred_region
      %s95 = ssub.s32 %s8, 1
      // Predicated region
      $region13: #{_encoder_impl.2} parent=11 // pred_check
        %p96 = pneg %p55
      $region14: #{_encoder_impl.2} parent=11 // pred_check_branch
        %98 = sbr.rel (%p96) target = $region16
      $region15: #{_encoder_impl.2} parent=11 // pred_region
        _
      $region16: #{_encoder_impl.2} parent=11 // pred_fallthru
        _
    $region12: #{_encoder_impl.2} parent=5 // pred_fallthru
      _
    %p99 = scmp.lt.s32.totalorder %s8, 4
    // Predicated region
    $region17: #{_encoder_impl.2} parent=5 // pred_check
      %p100 = pneg %p99
    $region18: #{_encoder_impl.2} parent=5 // pred_check_branch
      %102 = sbr.rel (%p100) target = $region20
    $region19: #{_encoder_impl.2} parent=5 // pred_region
      // Predicated region
      $region21: #{_encoder_impl.2} parent=19 // pred_check
        %p103 = pneg %p28
      $region22: #{_encoder_impl.2} parent=19 // pred_check_branch
        %105 = sbr.rel (%p103) target = $region24
      $region23: #{_encoder_impl.2} parent=19 // pred_region
        %s106 = smul.u32 4, %s8
        %p107 = scmp.lt.s32.totalorder %s106, 15
        %s108 = scalar_select %p107, %s106, 15
        %s109 = smul.addr %s108, 4
        %s110 = scalar_lea.vmem %s0, %s109
        %s111 = smul.u32 4, %s8
      $region24: #{_encoder_impl.2} parent=19 // pred_fallthru
        _
    $region20: #{_encoder_impl.2} parent=5 // pred_fallthru
      _
    %p112 = scmp.le.s32.totalorder 1, %s8
    %p113 = scmp.lt.s32.totalorder %s8, 5
    %p114 = pnand %p112, %p113
    %p115 = pneg %p114
    // Predicated region
    $region25: #{_encoder_impl.2} parent=5 // pred_check
      _
    $region26: #{_encoder_impl.2} parent=5 // pred_check_branch
      %117 = sbr.rel (%p114) target = $region28
    $region27: #{_encoder_impl.2} parent=5 // pred_region
      %s118 = ssub.s32 %s8, 1
      %s119 = smul.u32 4, %s13
      %p120 = scmp.lt.s32.totalorder %s119, 15
      %s121 = scalar_select %p120, %s119, 15
      %s122 = smul.addr %s121, 4
      %s123 = scalar_lea.vmem %s0, %s122
      %p124 = pneg %p34
      %p125 = pneg %p31
      %p126 = pneg %p55
      %p127 = pneg %p52
      %p128 = pneg %p81
      %p129 = pneg %p78
      %s130 = smul.u32 4, %s13
      %p131 = scmp.lt.s32.totalorder %s130, 15
      %s132 = scalar_select %p131, %s130, 15
      %s133 = smul.addr %s132, 4
      %s134 = scalar_lea.vmem %s2, %s133
      %s135 = smul.u32 4, %s13
      %p136 = scmp.lt.s32.totalorder %s135, 15
      %s137 = scalar_select %p136, %s135, 15
      %s138 = smul.addr %s137, 4
      %s139 = scalar_lea.vmem %s0, %s138
      %s140 = smul.u32 4, %s13
      %s141 = smul.u32 4, %s13
      %p142 = scmp.lt.s32.totalorder %s141, 15
      %s143 = scalar_select %p142, %s141, 15
      %s144 = smul.addr %s143, 4
      %s145 = scalar_lea.vmem %s2, %s144
      %s146 = smul.u32 4, %s13
      %v147 = vld [vmem:[%s139] sm:$0xf]
      %v148 = vld [vmem:[%s139 + $0x4] sm:$0xf]
      %v149 = vld [vmem:[%s139 + $0x8] sm:$0xf]
      %v150 = vld [vmem:[%s139 + $0xc] sm:$0xf]
      %v151 = vld [vmem:[%s1] sm:$0xf]
      %v152 = vld [vmem:[%s1 + $0x4] sm:$0xf]
      %v153 = vld [vmem:[%s1 + $0x8] sm:$0xf]
      %v154 = vld [vmem:[%s1 + $0xc] sm:$0xf]
      %v155 = vld [vmem:[%s1 + $0x10] sm:$0xf]
      %v156 = vld [vmem:[%s1 + $0x14] sm:$0xf]
      %v157 = vld [vmem:[%s1 + $0x18] sm:$0xf]
      %v158 = vld [vmem:[%s1 + $0x1c] sm:$0xf]
      %v159 = vld [vmem:[%s1 + $0x20] sm:$0xf]
      %v160 = vld [vmem:[%s1 + $0x24] sm:$0xf]
      %v161 = vld [vmem:[%s1 + $0x28] sm:$0xf]
      %v162 = vld [vmem:[%s1 + $0x2c] sm:$0xf]
      %v163 = vld [vmem:[%s1 + $0x30] sm:$0xf]
      %v164 = vld [vmem:[%s1 + $0x34] sm:$0xf]
      %v165 = vld [vmem:[%s1 + $0x38] sm:$0xf]
      %v166 = vld [vmem:[%s1 + $0x3c] sm:$0xf]
      %v171 = vunpack.c.l.b16 %v147
      %v172 = vunpack.c.l.b16 %v148
      %v173 = vunpack.c.l.b16 %v149
      %v174 = vunpack.c.l.b16 %v150
      %v175 = vpack.c.b16 %v172, %v171
      %v176 = vpack.c.b16 %v174, %v173
      %v195 = vunpack.c.l.b16 %v151
      %v196 = vunpack.c.l.b16 %v152
      %v197 = vunpack.c.l.b16 %v153
      %v198 = vunpack.c.l.b16 %v154
      %v199 = vunpack.c.l.b16 %v155
      %v200 = vunpack.c.l.b16 %v156
      %v201 = vunpack.c.l.b16 %v157
      %v202 = vunpack.c.l.b16 %v158
      %v203 = vunpack.c.l.b16 %v159
      %v204 = vunpack.c.l.b16 %v160
      %v205 = vunpack.c.l.b16 %v161
      %v206 = vunpack.c.l.b16 %v162
      %v207 = vunpack.c.l.b16 %v163
      %v208 = vunpack.c.l.b16 %v164
      %v209 = vunpack.c.l.b16 %v165
      %v210 = vunpack.c.l.b16 %v166
      %v211 = vpack.c.b16 %v196, %v195
      %v212 = vpack.c.b16 %v198, %v197
      %v213 = vpack.c.b16 %v200, %v199
      %v214 = vpack.c.b16 %v202, %v201
      %v215 = vpack.c.b16 %v204, %v203
      %v216 = vpack.c.b16 %v206, %v205
      %v217 = vpack.c.b16 %v208, %v207
      %v218 = vpack.c.b16 %v210, %v209
      %227 = vmatpush.bf16.msra.mxu0 %v218
      %228 = vmatpush.bf16.msra.mxu0 %v217
      %229 = vmatpush.bf16.msra.mxu0 %v216
      %230 = vmatpush.bf16.msra.mxu0 %v215
      %231 = vmatpush.bf16.msra.mxu0 %v214
      %232 = vmatpush.bf16.msra.mxu0 %v213
      %233 = vmatpush.bf16.msra.mxu0 %v212
      %234 = vmatpush.bf16.msra.mxu0 %v211
      %235 = vmatmul.bf16.gmra.mxu0 %v175
      %v236 = vpop.f32.mrf.mxu0
      %v237 = vadd.f32 0.0, %v236
      %v238 = vpop.f32.mrf.mxu0
      %v239 = vadd.f32 0.0, %v238
      %240 = vmatmul.bf16.gmra.mxu0 %v176
      %v241 = vpop.f32.mrf.mxu0
      %v242 = vadd.f32 0.0, %v241
      %v243 = vpop.f32.mrf.mxu0
      %v244 = vadd.f32 0.0, %v243
      %245 = vdwg.mxu0
      %v246 = vlaneseq
      %v247 = vand.u32 %v246, 127
      %vm248 = vcmp.eq.s32.totalorder %v247, 18
      %v249 = vsel %vm248, 1.0, %v237
      %v250 = vsel %vm248, 1.0, %v239
      %v251 = vsel %vm248, 1.0, %v242
      %v252 = vsel %vm248, 1.0, %v244
      %v253 = vpack.c.bf16 %v249, %v249
      %v254 = vpack.c.bf16 %v250, %v250
      %v255 = vpack.c.bf16 %v251, %v251
      %v256 = vpack.c.bf16 %v252, %v252
      %257 = vst [vmem:[%s145] sm:$0xf] %v253
      %258 = vst [vmem:[%s145 + $0x4] sm:$0xf] %v254
      %259 = vst [vmem:[%s145 + $0x8] sm:$0xf] %v255
      %260 = vst [vmem:[%s145 + $0xc] sm:$0xf] %v256
      %s261 = smul.u32 4, %s13
      %p262 = scmp.lt.s32.totalorder %s261, 15
      %s263 = scalar_select %p262, %s261, 15
      %s264 = smul.addr %s263, 4
      %s265 = scalar_lea.vmem %s2, %s264
      // Predicated region
      $region29: #{_encoder_impl.2} parent=27 // pred_check
        %p266 = pneg %p78
      $region30: #{_encoder_impl.2} parent=27 // pred_check_branch
        %268 = sbr.rel (%p266) target = $region32
      $region31: #{_encoder_impl.2} parent=27 // pred_region
        %s269 = smul.u32 4, %s13
      $region32: #{_encoder_impl.2} parent=27 // pred_fallthru
        _
    $region28: #{_encoder_impl.2} parent=5 // pred_fallthru
      _
    %p270 = scmp.le.s32.totalorder 2, %s8
    // Predicated region
    $region33: #{_encoder_impl.2} parent=5 // pred_check
      %p271 = pneg %p270
    $region34: #{_encoder_impl.2} parent=5 // pred_check_branch
      %273 = sbr.rel (%p271) target = $region36
    $region35: #{_encoder_impl.2} parent=5 // pred_region
      %s274 = ssub.s32 %s8, 2
      // Predicated region
      $region37: #{_encoder_impl.2} parent=35 // pred_check
        %p275 = pneg %p84
      $region38: #{_encoder_impl.2} parent=35 // pred_check_branch
        %277 = sbr.rel (%p275) target = $region40
      $region39: #{_encoder_impl.2} parent=35 // pred_region
        %s278 = smul.u32 4, %s14
        %p279 = scmp.lt.s32.totalorder %s278, 15
        %s280 = scalar_select %p279, %s278, 15
        %s281 = smul.addr %s280, 4
        %s282 = scalar_lea.vmem %s2, %s281
      $region40: #{_encoder_impl.2} parent=35 // pred_fallthru
        _
    $region36: #{_encoder_impl.2} parent=5 // pred_fallthru
      _
  $region6: #{_encoder_impl.2} parent=0 // loop_footer
    %s12 = sadd.s32 1, %s8
  $region7: #{_encoder_impl.2} parent=0 // loop_footer_branch
    %7 = sbr.rel target = $region3
  $region8: #{_encoder_impl.2} parent=0 // loop_exit
    _

// kernel: _encoder_impl.3
$region0: #{_encoder_impl.3}
  #allocation0 [shape = 'u32[]', space=smem, size = 0x4, offset = 0x4, fixed_abs, tag = 'smem constant byte address 0x4 - core index']
  #allocation1 [shape = 'u32[72,128]{1,0:T(1,128)}', space=vmem, size = 0x9000, scoped, tag = 'internal scratch']
  %s0 = inlined_call_operand.vmem [shape: f32[128,1], index: 0, kind: input, shape index: {}]
  %s1 = inlined_call_operand.vmem [shape: f32[1,128], index: 1, kind: input, shape index: {}]
  %s2 = inlined_call_operand.vmem [shape: s8[128,128], index: 2, kind: input, shape index: {}]
  %s3 = inlined_call_operand.vmem [shape: bf16[128,128], index: 3, kind: input, shape index: {}]
  %s4 = inlined_call_operand.vmem [shape: f32[1,128], index: 4, kind: input, shape index: {}]
  %s5 = inlined_call_operand.vmem [shape: bf16[128,128], index: 5, kind: input, shape index: {}]
  %s6 = inlined_call_operand.vmem [shape: f32[1,128], index: 6, kind: input, shape index: {}]
  %s7 = inlined_call_operand.vmem [shape: f32[128,128], index: 7, kind: output, shape index: {}]
  %s8 = sld [smem:[#allocation0]]
  $region61: #{_encoder_impl.3} parent=0
    _
  %s10 = ssub.s32 1, %s8
  %s11 = scalar_select 0, %s10, %s8
  loop: start=0, step=1, limit=6
  $region2: #{_encoder_impl.3} parent=0 // loop_pre_header
    _
  $region3: #{_encoder_impl.3} parent=0 // loop_header
    %s13 = sphi 0, %s17
    %p14 = scmp.ge.s32.totalorder %s13, 6
    %s23 = sphi 0, %s25
    %s26 = sphi 0, %s23
    %s27 = sphi 0, %s26
    %s43 = sphi 0, %s27
    %s47 = sphi 0, %s47
    %s49 = sphi 0, %s47
    %s50 = sphi 0, %s49
    %s64 = sphi 0, %s50
    %s70 = sphi 0, %s72
    %s73 = sphi 0, %s70
    %s74 = sphi 0, %s73
    %s90 = sphi 0, %s74
    %s94 = sphi 0, %s94
    %s96 = sphi 0, %s94
    %s97 = sphi 0, %s96
    %s111 = sphi 0, %s97
    %s115 = sphi 0, %s115
    %s117 = sphi 0, %s115
    %s118 = sphi 0, %s117
    %s132 = sphi 0, %s118
    %s136 = sphi 0, %s136
    %s138 = sphi 0, %s136
    %s139 = sphi 0, %s138
    %s153 = sphi 0, %s139
    %s157 = sphi 0, %s157
    %s159 = sphi 0, %s157
    %s160 = sphi 0, %s159
    %s174 = sphi 0, %s160
    %s180 = sphi 0, %s182
    %s183 = sphi 0, %s180
    %s184 = sphi 0, %s183
    %s200 = sphi 0, %s184
  $region4: #{_encoder_impl.3} parent=0 // loop_header_branch
    %16 = sbr.rel (%p14) target = $region8
  $region5: #{_encoder_impl.3} parent=0 // loop_body
    %s18 = ssub.s32 %s13, 1
    %s19 = ssub.s32 %s13, 2
    %s20 = sadd.s32 %s13, 1
    %s21 = ssub.s32 %s13, %s20
    %p22 = scmp.eq.s32.totalorder %s21, 0
    %s24 = sadd.s32 %s23, 1
    %s25 = scalar_select %p22, %s23, %s24
    %p28 = pneg %p22
    %p29 = scmp.eq.s32.totalorder %s13, 3
    %p30 = por %p28, %p29
    %p31 = scmp.ne.s32.totalorder %s23, %s26
    %p32 = scmp.eq.s32.totalorder %s13, 0
    %p33 = por %p31, %p32
    %p34 = scmp.ne.s32.totalorder %s23, %s26
    %p35 = scmp.eq.s32.totalorder %s18, 3
    %p36 = por %p34, %p35
    %p37 = scmp.ne.s32.totalorder %s26, %s27
    %p38 = scmp.eq.s32.totalorder %s18, 0
    %p39 = por %p37, %p38
    %p40 = scmp.ne.s32.totalorder %s26, %s27
    %p41 = scmp.eq.s32.totalorder %s19, 3
    %p42 = por %p40, %p41
    %p44 = scmp.ne.s32.totalorder %s27, %s43
    %p45 = scmp.eq.s32.totalorder %s19, 0
    %p46 = por %p44, %p45
    %s48 = sadd.s32 %s47, 1
    %p51 = scmp.eq.s32.totalorder %s13, 3
    %p52 = scmp.ne.s32.totalorder %s47, %s49
    %p53 = scmp.eq.s32.totalorder %s13, 0
    %p54 = por %p52, %p53
    %p55 = scmp.ne.s32.totalorder %s47, %s49
    %p56 = scmp.eq.s32.totalorder %s18, 3
    %p57 = por %p55, %p56
    %p58 = scmp.ne.s32.totalorder %s49, %s50
    %p59 = scmp.eq.s32.totalorder %s18, 0
    %p60 = por %p58, %p59
    %p61 = scmp.ne.s32.totalorder %s49, %s50
    %p62 = scmp.eq.s32.totalorder %s19, 3
    %p63 = por %p61, %p62
    %p65 = scmp.ne.s32.totalorder %s50, %s64
    %p66 = scmp.eq.s32.totalorder %s19, 0
    %p67 = por %p65, %p66
    %s68 = ssub.s32 %s13, %s20
    %p69 = scmp.eq.s32.totalorder %s68, 0
    %s71 = sadd.s32 %s70, 1
    %s72 = scalar_select %p69, %s70, %s71
    %p75 = pneg %p69
    %p76 = scmp.eq.s32.totalorder %s13, 3
    %p77 = por %p75, %p76
    %p78 = scmp.ne.s32.totalorder %s70, %s73
    %p79 = scmp.eq.s32.totalorder %s13, 0
    %p80 = por %p78, %p79
    %p81 = scmp.ne.s32.totalorder %s70, %s73
    %p82 = scmp.eq.s32.totalorder %s18, 3
    %p83 = por %p81, %p82
    %p84 = scmp.ne.s32.totalorder %s73, %s74
    %p85 = scmp.eq.s32.totalorder %s18, 0
    %p86 = por %p84, %p85
    %p87 = scmp.ne.s32.totalorder %s73, %s74
    %p88 = scmp.eq.s32.totalorder %s19, 3
    %p89 = por %p87, %p88
    %p91 = scmp.ne.s32.totalorder %s74, %s90
    %p92 = scmp.eq.s32.totalorder %s19, 0
    %p93 = por %p91, %p92
    %s95 = sadd.s32 %s94, 1
    %p98 = scmp.eq.s32.totalorder %s13, 3
    %p99 = scmp.ne.s32.totalorder %s94, %s96
    %p100 = scmp.eq.s32.totalorder %s13, 0
    %p101 = por %p99, %p100
    %p102 = scmp.ne.s32.totalorder %s94, %s96
    %p103 = scmp.eq.s32.totalorder %s18, 3
    %p104 = por %p102, %p103
    %p105 = scmp.ne.s32.totalorder %s96, %s97
    %p106 = scmp.eq.s32.totalorder %s18, 0
    %p107 = por %p105, %p106
    %p108 = scmp.ne.s32.totalorder %s96, %s97
    %p109 = scmp.eq.s32.totalorder %s19, 3
    %p110 = por %p108, %p109
    %p112 = scmp.ne.s32.totalorder %s97, %s111
    %p113 = scmp.eq.s32.totalorder %s19, 0
    %p114 = por %p112, %p113
    %s116 = sadd.s32 %s115, 1
    %p119 = scmp.eq.s32.totalorder %s13, 3
    %p120 = scmp.ne.s32.totalorder %s115, %s117
    %p121 = scmp.eq.s32.totalorder %s13, 0
    %p122 = por %p120, %p121
    %p123 = scmp.ne.s32.totalorder %s115, %s117
    %p124 = scmp.eq.s32.totalorder %s18, 3
    %p125 = por %p123, %p124
    %p126 = scmp.ne.s32.totalorder %s117, %s118
    %p127 = scmp.eq.s32.totalorder %s18, 0
    %p128 = por %p126, %p127
    %p129 = scmp.ne.s32.totalorder %s117, %s118
    %p130 = scmp.eq.s32.totalorder %s19, 3
    %p131 = por %p129, %p130
    %p133 = scmp.ne.s32.totalorder %s118, %s132
    %p134 = scmp.eq.s32.totalorder %s19, 0
    %p135 = por %p133, %p134
    %s137 = sadd.s32 %s136, 1
    %p140 = scmp.eq.s32.totalorder %s13, 3
    %p141 = scmp.ne.s32.totalorder %s136, %s138
    %p142 = scmp.eq.s32.totalorder %s13, 0
    %p143 = por %p141, %p142
    %p144 = scmp.ne.s32.totalorder %s136, %s138
    %p145 = scmp.eq.s32.totalorder %s18, 3
    %p146 = por %p144, %p145
    %p147 = scmp.ne.s32.totalorder %s138, %s139
    %p148 = scmp.eq.s32.totalorder %s18, 0
    %p149 = por %p147, %p148
    %p150 = scmp.ne.s32.totalorder %s138, %s139
    %p151 = scmp.eq.s32.totalorder %s19, 3
    %p152 = por %p150, %p151
    %p154 = scmp.ne.s32.totalorder %s139, %s153
    %p155 = scmp.eq.s32.totalorder %s19, 0
    %p156 = por %p154, %p155
    %s158 = sadd.s32 %s157, 1
    %p161 = scmp.eq.s32.totalorder %s13, 3
    %p162 = scmp.ne.s32.totalorder %s157, %s159
    %p163 = scmp.eq.s32.totalorder %s13, 0
    %p164 = por %p162, %p163
    %p165 = scmp.ne.s32.totalorder %s157, %s159
    %p166 = scmp.eq.s32.totalorder %s18, 3
    %p167 = por %p165, %p166
    %p168 = scmp.ne.s32.totalorder %s159, %s160
    %p169 = scmp.eq.s32.totalorder %s18, 0
    %p170 = por %p168, %p169
    %p171 = scmp.ne.s32.totalorder %s159, %s160
    %p172 = scmp.eq.s32.totalorder %s19, 3
    %p173 = por %p171, %p172
    %p175 = scmp.ne.s32.totalorder %s160, %s174
    %p176 = scmp.eq.s32.totalorder %s19, 0
    %p177 = por %p175, %p176
    %s178 = ssub.s32 %s13, %s20
    %p179 = scmp.eq.s32.totalorder %s178, 0
    %s181 = sadd.s32 %s180, 1
    %s182 = scalar_select %p179, %s180, %s181
    %p185 = pneg %p179
    %p186 = scmp.eq.s32.totalorder %s13, 3
    %p187 = por %p185, %p186
    %p188 = scmp.ne.s32.totalorder %s180, %s183
    %p189 = scmp.eq.s32.totalorder %s13, 0
    %p190 = por %p188, %p189
    %p191 = scmp.ne.s32.totalorder %s180, %s183
    %p192 = scmp.eq.s32.totalorder %s18, 3
    %p193 = por %p191, %p192
    %p194 = scmp.ne.s32.totalorder %s183, %s184
    %p195 = scmp.eq.s32.totalorder %s18, 0
    %p196 = por %p194, %p195
    %p197 = scmp.ne.s32.totalorder %s183, %s184
    %p198 = scmp.eq.s32.totalorder %s19, 3
    %p199 = por %p197, %p198
    %p201 = scmp.ne.s32.totalorder %s184, %s200
    %p202 = scmp.eq.s32.totalorder %s19, 0
    %p203 = por %p201, %p202
    %p204 = scmp.le.s32.totalorder 1, %s13
    %p205 = scmp.lt.s32.totalorder %s13, 5
    %p206 = pnand %p204, %p205
    %p207 = pneg %p206
    // Predicated region
    $region9: #{_encoder_impl.3} parent=5 // pred_check
      _
    $region10: #{_encoder_impl.3} parent=5 // pred_check_branch
      %209 = sbr.rel (%p206) target = $region12
    $region11: #{_encoder_impl.3} parent=5 // pred_region
      %s210 = ssub.s32 %s13, 1
      // Predicated region
      $region13: #{_encoder_impl.3} parent=11 // pred_check
        %p211 = pneg %p60
      $region14: #{_encoder_impl.3} parent=11 // pred_check_branch
        %213 = sbr.rel (%p211) target = $region16
      $region15: #{_encoder_impl.3} parent=11 // pred_region
        _
      $region16: #{_encoder_impl.3} parent=11 // pred_fallthru
        _
      // Predicated region
      $region17: #{_encoder_impl.3} parent=11 // pred_check
        %p214 = pneg %p107
      $region18: #{_encoder_impl.3} parent=11 // pred_check_branch
        %216 = sbr.rel (%p214) target = $region20
      $region19: #{_encoder_impl.3} parent=11 // pred_region
        _
      $region20: #{_encoder_impl.3} parent=11 // pred_fallthru
        _
      // Predicated region
      $region21: #{_encoder_impl.3} parent=11 // pred_check
        %p217 = pneg %p128
      $region22: #{_encoder_impl.3} parent=11 // pred_check_branch
        %219 = sbr.rel (%p217) target = $region24
      $region23: #{_encoder_impl.3} parent=11 // pred_region
        _
      $region24: #{_encoder_impl.3} parent=11 // pred_fallthru
        _
      // Predicated region
      $region25: #{_encoder_impl.3} parent=11 // pred_check
        %p220 = pneg %p149
      $region26: #{_encoder_impl.3} parent=11 // pred_check_branch
        %222 = sbr.rel (%p220) target = $region28
      $region27: #{_encoder_impl.3} parent=11 // pred_region
        _
      $region28: #{_encoder_impl.3} parent=11 // pred_fallthru
        _
      // Predicated region
      $region29: #{_encoder_impl.3} parent=11 // pred_check
        %p223 = pneg %p170
      $region30: #{_encoder_impl.3} parent=11 // pred_check_branch
        %225 = sbr.rel (%p223) target = $region32
      $region31: #{_encoder_impl.3} parent=11 // pred_region
        _
      $region32: #{_encoder_impl.3} parent=11 // pred_fallthru
        _
    $region12: #{_encoder_impl.3} parent=5 // pred_fallthru
      _
    %p226 = scmp.lt.s32.totalorder %s13, 4
    // Predicated region
    $region33: #{_encoder_impl.3} parent=5 // pred_check
      %p227 = pneg %p226
    $region34: #{_encoder_impl.3} parent=5 // pred_check_branch
      %229 = sbr.rel (%p227) target = $region36
    $region35: #{_encoder_impl.3} parent=5 // pred_region
      // Predicated region
      $region37: #{_encoder_impl.3} parent=35 // pred_check
        %p230 = pneg %p33
      $region38: #{_encoder_impl.3} parent=35 // pred_check_branch
        %232 = sbr.rel (%p230) target = $region40
      $region39: #{_encoder_impl.3} parent=35 // pred_region
        %s233 = smul.u32 4, %s13
        %p234 = scmp.lt.s32.totalorder %s233, 15
        %s235 = scalar_select %p234, %s233, 15
        %s236 = smul.addr %s235, 8
        %s237 = scalar_lea.vmem %s0, %s236
        %s238 = smul.u32 4, %s13
      $region40: #{_encoder_impl.3} parent=35 // pred_fallthru
        _
      // Predicated region
      $region41: #{_encoder_impl.3} parent=35 // pred_check
        %p239 = pneg %p80
      $region42: #{_encoder_impl.3} parent=35 // pred_check_branch
        %241 = sbr.rel (%p239) target = $region44
      $region43: #{_encoder_impl.3} parent=35 // pred_region
        %s242 = smul.u32 4, %s13
        %p243 = scmp.lt.s32.totalorder %s242, 15
        %s244 = scalar_select %p243, %s242, 15
        %s245 = smul.addr %s244, 2
        %s246 = scalar_lea.vmem %s2, %s245
        %s247 = smul.u32 4, %s13
      $region44: #{_encoder_impl.3} parent=35 // pred_fallthru
        _
    $region36: #{_encoder_impl.3} parent=5 // pred_fallthru
      _
    %p248 = scmp.le.s32.totalorder 1, %s13
    %p249 = scmp.lt.s32.totalorder %s13, 5
    %p250 = pnand %p248, %p249
    %p251 = pneg %p250
    // Predicated region
    $region45: #{_encoder_impl.3} parent=5 // pred_check
      _
    $region46: #{_encoder_impl.3} parent=5 // pred_check_branch
      %253 = sbr.rel (%p250) target = $region48
    $region47: #{_encoder_impl.3} parent=5 // pred_region
      %s254 = ssub.s32 %s13, 1
      %s255 = smul.u32 4, %s18
      %p256 = scmp.lt.s32.totalorder %s255, 15
      %s257 = scalar_select %p256, %s255, 15
      %s258 = smul.addr %s257, 8
      %s259 = scalar_lea.vmem %s0, %s258
      %p260 = pneg %p39
      %p261 = pneg %p36
      %p262 = pneg %p60
      %p263 = pneg %p57
      %s264 = smul.u32 4, %s18
      %p265 = scmp.lt.s32.totalorder %s264, 15
      %s266 = scalar_select %p265, %s264, 15
      %s267 = smul.addr %s266, 2
      %s268 = scalar_lea.vmem %s2, %s267
      %p269 = pneg %p86
      %p270 = pneg %p83
      %p271 = pneg %p107
      %p272 = pneg %p104
      %p273 = pneg %p128
      %p274 = pneg %p125
      %p275 = pneg %p149
      %p276 = pneg %p146
      %p277 = pneg %p170
      %p278 = pneg %p167
      %p279 = pneg %p196
      %p280 = pneg %p193
      %s281 = smul.u32 4, %s18
      %p282 = scmp.lt.s32.totalorder %s281, 15
      %s283 = scalar_select %p282, %s281, 15
      %s284 = smul.addr %s283, 8
      %s285 = scalar_lea.vmem %s7, %s284
      %s286 = smul.u32 4, %s18
      %p287 = scmp.lt.s32.totalorder %s286, 15
      %s288 = scalar_select %p287, %s286, 15
      %s289 = smul.addr %s288, 8
      %s290 = scalar_lea.vmem %s0, %s289
      %s291 = smul.u32 4, %s18
      %s292 = smul.u32 4, %s18
      %p293 = scmp.lt.s32.totalorder %s292, 15
      %s294 = scalar_select %p293, %s292, 15
      %s295 = smul.addr %s294, 2
      %s296 = scalar_lea.vmem %s2, %s295
      %s297 = smul.u32 4, %s18
      %s298 = smul.u32 4, %s18
      %p299 = scmp.lt.s32.totalorder %s298, 15
      %s300 = scalar_select %p299, %s298, 15
      %s301 = smul.addr %s300, 8
      %s302 = scalar_lea.vmem %s7, %s301
      %s303 = smul.u32 4, %s18
      %v304 = vld [vmem:[%s290] sm:$0xff]
      %v305 = vld [vmem:[%s290 + $0x8] sm:$0xff]
      %v306 = vld [vmem:[%s290 + $0x10] sm:$0xff]
      %v307 = vld [vmem:[%s290 + $0x18] sm:$0xff]
      %v308 = vld [vmem:[%s1] sm:$0x1]
      %310 = vset.pattern.permute.xlu0 0
      %311 = vperm.xlu0 %310, %v304
      %v312 = vpop.permute.xlu0 %311
      %315 = vset.pattern.permute.xlu0 0
      %316 = vperm.xlu0 %315, %v305
      %v317 = vpop.permute.xlu0 %316
      %320 = vset.pattern.permute.xlu0 0
      %321 = vperm.xlu0 %320, %v306
      %v322 = vpop.permute.xlu0 %321
      %325 = vset.pattern.permute.xlu0 0
      %326 = vperm.xlu0 %325, %v307
      %v327 = vpop.permute.xlu0 %326
      %v330 = vperm.slane %v308, 0
      %v332 = vadd.f32 %v312, %v330
      %v333 = vadd.f32 %v317, %v330
      %v334 = vadd.f32 %v322, %v330
      %v335 = vadd.f32 %v327, %v330
      %vm336 = vcmp.gt.f32.partialorder %v332, 0.0
      %vm337 = vcmp.gt.f32.partialorder %v333, 0.0
      %vm338 = vcmp.gt.f32.partialorder %v334, 0.0
      %vm339 = vcmp.gt.f32.partialorder %v335, 0.0
      %v340 = vmul.f32 %v332, 0.2
      %v341 = vmul.f32 %v333, 0.2
      %v342 = vmul.f32 %v334, 0.2
      %v343 = vmul.f32 %v335, 0.2
      %v344 = vsel %vm336, %v332, %v340
      %v345 = vsel %vm337, %v333, %v341
      %v346 = vsel %vm338, %v334, %v342
      %v347 = vsel %vm339, %v335, %v343
      %v348 = vld [vmem:[%s296] sm:$0x3]
      %v349 = vld [vmem:[%s296 + $0x2] sm:$0x3]
      %v350 = vld [vmem:[%s296 + $0x4] sm:$0x3]
      %v351 = vld [vmem:[%s296 + $0x6] sm:$0x3]
      %v352 = vunpack.c.0.s8 %v348
      %v353 = vunpack.c.0.s8 %v349
      %v354 = vunpack.c.0.s8 %v350
      %v355 = vunpack.c.0.s8 %v351
      %v356 = vcvt.s32.f32 %v352
      %v357 = vcvt.s32.f32 %v353
      %v358 = vcvt.s32.f32 %v354
      %v359 = vcvt.s32.f32 %v355
      %v360 = vsub.f32 %v356, 1.0
      %v361 = vsub.f32 %v357, 1.0
      %v362 = vsub.f32 %v358, 1.0
      %v363 = vsub.f32 %v359, 1.0
      %v364 = vmul.f32 %v360, 1e+09
      %v365 = vmul.f32 %v361, 1e+09
      %v366 = vmul.f32 %v362, 1e+09
      %v367 = vmul.f32 %v363, 1e+09
      %v368 = vadd.f32 %v344, %v364
      %v369 = vadd.f32 %v345, %v365
      %v370 = vadd.f32 %v346, %v366
      %v371 = vadd.f32 %v347, %v367
      %372 = vmax.xlane.f32.xlu0 %v368
      %v373 = vpop.xlane.xlu0 %372
      %374 = vmax.xlane.f32.xlu0 %v369
      %v375 = vpop.xlane.xlu0 %374
      %376 = vmax.xlane.f32.xlu0 %v370
      %v377 = vpop.xlane.xlu0 %376
      %378 = vmax.xlane.f32.xlu0 %v371
      %v379 = vpop.xlane.xlu0 %378
      %v380 = vsub.f32 %v368, %v373
      %v381 = vsub.f32 %v369, %v375
      %v382 = vsub.f32 %v370, %v377
      %v383 = vsub.f32 %v371, %v379
      %v384 = vmul.f32 %v380, 1.442695
      %v385 = vpow.pop %v384
      %v386 = vmul.f32 %v381, 1.442695
      %v387 = vpow.pop %v386
      %v388 = vmul.f32 %v382, 1.442695
      %v389 = vpow.pop %v388
      %v390 = vmul.f32 %v383, 1.442695
      %v391 = vpow.pop %v390
      %v392 = vpack.c.bf16 %v387, %v385
      %v393 = vpack.c.bf16 %v391, %v389
      %v394 = vld [vmem:[%s3] sm:$0xf]
      %v395 = vld [vmem:[%s3 + $0x4] sm:$0xf]
      %v396 = vld [vmem:[%s3 + $0x8] sm:$0xf]
      %v397 = vld [vmem:[%s3 + $0xc] sm:$0xf]
      %v398 = vld [vmem:[%s3 + $0x10] sm:$0xf]
      %v399 = vld [vmem:[%s3 + $0x14] sm:$0xf]
      %v400 = vld [vmem:[%s3 + $0x18] sm:$0xf]
      %v401 = vld [vmem:[%s3 + $0x1c] sm:$0xf]
      %v402 = vld [vmem:[%s3 + $0x20] sm:$0xf]
      %v403 = vld [vmem:[%s3 + $0x24] sm:$0xf]
      %v404 = vld [vmem:[%s3 + $0x28] sm:$0xf]
      %v405 = vld [vmem:[%s3 + $0x2c] sm:$0xf]
      %v406 = vld [vmem:[%s3 + $0x30] sm:$0xf]
      %v407 = vld [vmem:[%s3 + $0x34] sm:$0xf]
      %v408 = vld [vmem:[%s3 + $0x38] sm:$0xf]
      %v409 = vld [vmem:[%s3 + $0x3c] sm:$0xf]
      %v426 = vunpack.c.l.b16 %v394
      %v427 = vunpack.c.l.b16 %v395
      %v428 = vunpack.c.l.b16 %v396
      %v429 = vunpack.c.l.b16 %v397
      %v430 = vunpack.c.l.b16 %v398
      %v431 = vunpack.c.l.b16 %v399
      %v432 = vunpack.c.l.b16 %v400
      %v433 = vunpack.c.l.b16 %v401
      %v434 = vunpack.c.l.b16 %v402
      %v435 = vunpack.c.l.b16 %v403
      %v436 = vunpack.c.l.b16 %v404
      %v437 = vunpack.c.l.b16 %v405
      %v438 = vunpack.c.l.b16 %v406
      %v439 = vunpack.c.l.b16 %v407
      %v440 = vunpack.c.l.b16 %v408
      %v441 = vunpack.c.l.b16 %v409
      %v442 = vpack.c.b16 %v427, %v426
      %v443 = vpack.c.b16 %v429, %v428
      %v444 = vpack.c.b16 %v431, %v430
      %v445 = vpack.c.b16 %v433, %v432
      %v446 = vpack.c.b16 %v435, %v434
      %v447 = vpack.c.b16 %v437, %v436
      %v448 = vpack.c.b16 %v439, %v438
      %v449 = vpack.c.b16 %v441, %v440
      %458 = vmatpush.bf16.msra.mxu0 %v449
      %459 = vmatpush.bf16.msra.mxu0 %v448
      %460 = vmatpush.bf16.msra.mxu0 %v447
      %461 = vmatpush.bf16.msra.mxu0 %v446
      %462 = vmatpush.bf16.msra.mxu0 %v445
      %463 = vmatpush.bf16.msra.mxu0 %v444
      %464 = vmatpush.bf16.msra.mxu0 %v443
      %465 = vmatpush.bf16.msra.mxu0 %v442
      %466 = vmatmul.bf16.gmra.mxu0 %v392
      %v467 = vpop.f32.mrf.mxu0
      %v468 = vadd.f32 0.0, %v467
      %v469 = vpop.f32.mrf.mxu0
      %v470 = vadd.f32 0.0, %v469
      %471 = vmatmul.bf16.gmra.mxu0 %v393
      %v472 = vpop.f32.mrf.mxu0
      %v473 = vadd.f32 0.0, %v472
      %v474 = vpop.f32.mrf.mxu0
      %v475 = vadd.f32 0.0, %v474
      %476 = vdwg.mxu0
      %v477 = vrcp.pop %v468
      %v478 = vrcp.pop %v470
      %v479 = vrcp.pop %v473
      %v480 = vrcp.pop %v475
      %482 = vset.pattern.permute.xlu0 18
      %483 = vperm.xlu0 %482, %v477
      %v484 = vpop.permute.xlu0 %483
      %487 = vset.pattern.permute.xlu0 18
      %488 = vperm.xlu0 %487, %v478
      %v489 = vpop.permute.xlu0 %488
      %492 = vset.pattern.permute.xlu0 18
      %493 = vperm.xlu0 %492, %v479
      %v494 = vpop.permute.xlu0 %493
      %497 = vset.pattern.permute.xlu0 18
      %498 = vperm.xlu0 %497, %v480
      %v499 = vpop.permute.xlu0 %498
      %v501 = vmul.f32 %v468, %v484
      %v502 = vmul.f32 %v470, %v489
      %v503 = vmul.f32 %v473, %v494
      %v504 = vmul.f32 %v475, %v499
      %v505 = vld [vmem:[%s4] sm:$0x1]
      %v507 = vperm.slane %v505, 0
      %v509 = vadd.f32 %v501, %v507
      %v510 = vadd.f32 %v502, %v507
      %v511 = vadd.f32 %v503, %v507
      %v512 = vadd.f32 %v504, %v507
      %v513 = vmax.f32 %v509, 0.0
      %v514 = vmax.f32 %v510, 0.0
      %v515 = vmax.f32 %v511, 0.0
      %v516 = vmax.f32 %v512, 0.0
      %v517 = vpack.c.bf16 %v514, %v513
      %v518 = vpack.c.bf16 %v516, %v515
      %v519 = vld [vmem:[%s5] sm:$0xf]
      %v520 = vld [vmem:[%s5 + $0x4] sm:$0xf]
      %v521 = vld [vmem:[%s5 + $0x8] sm:$0xf]
      %v522 = vld [vmem:[%s5 + $0xc] sm:$0xf]
      %v523 = vld [vmem:[%s5 + $0x10] sm:$0xf]
      %v524 = vld [vmem:[%s5 + $0x14] sm:$0xf]
      %v525 = vld [vmem:[%s5 + $0x18] sm:$0xf]
      %v526 = vld [vmem:[%s5 + $0x1c] sm:$0xf]
      %v527 = vld [vmem:[%s5 + $0x20] sm:$0xf]
      %v528 = vld [vmem:[%s5 + $0x24] sm:$0xf]
      %v529 = vld [vmem:[%s5 + $0x28] sm:$0xf]
      %v530 = vld [vmem:[%s5 + $0x2c] sm:$0xf]
      %v531 = vld [vmem:[%s5 + $0x30] sm:$0xf]
      %v532 = vld [vmem:[%s5 + $0x34] sm:$0xf]
      %v533 = vld [vmem:[%s5 + $0x38] sm:$0xf]
      %v534 = vld [vmem:[%s5 + $0x3c] sm:$0xf]
      %v535 = vld [vmem:[%s6] sm:$0x1]
      %v537 = vperm.slane %v535, 0
      %v555 = vunpack.c.l.b16 %v519
      %v556 = vunpack.c.l.b16 %v520
      %v557 = vunpack.c.l.b16 %v521
      %v558 = vunpack.c.l.b16 %v522
      %v559 = vunpack.c.l.b16 %v523
      %v560 = vunpack.c.l.b16 %v524
      %v561 = vunpack.c.l.b16 %v525
      %v562 = vunpack.c.l.b16 %v526
      %v563 = vunpack.c.l.b16 %v527
      %v564 = vunpack.c.l.b16 %v528
      %v565 = vunpack.c.l.b16 %v529
      %v566 = vunpack.c.l.b16 %v530
      %v567 = vunpack.c.l.b16 %v531
      %v568 = vunpack.c.l.b16 %v532
      %v569 = vunpack.c.l.b16 %v533
      %v570 = vunpack.c.l.b16 %v534
      %v571 = vpack.c.b16 %v556, %v555
      %v572 = vpack.c.b16 %v558, %v557
      %v573 = vpack.c.b16 %v560, %v559
      %v574 = vpack.c.b16 %v562, %v561
      %v575 = vpack.c.b16 %v564, %v563
      %v576 = vpack.c.b16 %v566, %v565
      %v577 = vpack.c.b16 %v568, %v567
      %v578 = vpack.c.b16 %v570, %v569
      %587 = vmatpush.bf16.msra.mxu0 %v578
      %588 = vmatpush.bf16.msra.mxu0 %v577
      %589 = vmatpush.bf16.msra.mxu0 %v576
      %590 = vmatpush.bf16.msra.mxu0 %v575
      %591 = vmatpush.bf16.msra.mxu0 %v574
      %592 = vmatpush.bf16.msra.mxu0 %v573
      %593 = vmatpush.bf16.msra.mxu0 %v572
      %594 = vmatpush.bf16.msra.mxu0 %v571
      %595 = vmatmul.bf16.gmra.mxu0 %v517
      %v596 = vpop.f32.mrf.mxu0
      %v597 = vadd.f32 %v537, %v596
      %v598 = vpop.f32.mrf.mxu0
      %v599 = vadd.f32 %v537, %v598
      %600 = vmatmul.bf16.gmra.mxu0 %v518
      %v601 = vpop.f32.mrf.mxu0
      %v602 = vadd.f32 %v537, %v601
      %v603 = vpop.f32.mrf.mxu0
      %v604 = vadd.f32 %v537, %v603
      %605 = vdwg.mxu0
      %606 = vst [vmem:[%s302] sm:$0xff] %v597
      %607 = vst [vmem:[%s302 + $0x8] sm:$0xff] %v599
      %608 = vst [vmem:[%s302 + $0x10] sm:$0xff] %v602
      %609 = vst [vmem:[%s302 + $0x18] sm:$0xff] %v604
      %s610 = smul.u32 4, %s18
      %p611 = scmp.lt.s32.totalorder %s610, 15
      %s612 = scalar_select %p611, %s610, 15
      %s613 = smul.addr %s612, 8
      %s614 = scalar_lea.vmem %s7, %s613
      // Predicated region
      $region49: #{_encoder_impl.3} parent=47 // pred_check
        %p615 = pneg %p193
      $region50: #{_encoder_impl.3} parent=47 // pred_check_branch
        %617 = sbr.rel (%p615) target = $region52
      $region51: #{_encoder_impl.3} parent=47 // pred_region
        %s618 = smul.u32 4, %s18
      $region52: #{_encoder_impl.3} parent=47 // pred_fallthru
        _
    $region48: #{_encoder_impl.3} parent=5 // pred_fallthru
      _
    %p619 = scmp.le.s32.totalorder 2, %s13
    // Predicated region
    $region53: #{_encoder_impl.3} parent=5 // pred_check
      %p620 = pneg %p619
    $region54: #{_encoder_impl.3} parent=5 // pred_check_branch
      %622 = sbr.rel (%p620) target = $region56
    $region55: #{_encoder_impl.3} parent=5 // pred_region
      %s623 = ssub.s32 %s13, 2
      // Predicated region
      $region57: #{_encoder_impl.3} parent=55 // pred_check
        %p624 = pneg %p199
      $region58: #{_encoder_impl.3} parent=55 // pred_check_branch
        %626 = sbr.rel (%p624) target = $region60
      $region59: #{_encoder_impl.3} parent=55 // pred_region
        %s627 = smul.u32 4, %s19
        %p628 = scmp.lt.s32.totalorder %s627, 15
        %s629 = scalar_select %p628, %s627, 15
        %s630 = smul.addr %s629, 8
        %s631 = scalar_lea.vmem %s7, %s630
      $region60: #{_encoder_impl.3} parent=55 // pred_fallthru
        _
    $region56: #{_encoder_impl.3} parent=5 // pred_fallthru
      _
  $region6: #{_encoder_impl.3} parent=0 // loop_footer
    %s17 = sadd.s32 1, %s13
  $region7: #{_encoder_impl.3} parent=0 // loop_footer_branch
    %12 = sbr.rel target = $region3
  $region8: #{_encoder_impl.3} parent=0 // loop_exit
    _

</llo_original>
